<compile_context>
chip_gen: v7x
topology: tpu7x:2x2x1
jax: 0.10.0
libtpu: 0.0.40
codegen_flags: <defaults>
</compile_context>

<pallas_src>
import jax
import jax.numpy as jnp
from jax.experimental import pallas as pl
from jax.experimental.pallas import tpu as pltpu


def _round_up(x, m):
    return (x + m - 1) // m * m


def _head_kernel(x_ref, w1_ref, b1_ref, w2_ref, b2_ref, batch_ref,
                 logits_ref, pmax_ref):
    """One lane-tile (TM nodes) of the classification head, transposed layout.

    x_ref:      (H, TM)         bf16  node embeddings, nodes on lanes
    w1_ref:     (H2_pad, H)     bf16  out_proj weight, transposed + zero-padded
    b1_ref:     (H2_pad, 1)     f32
    w2_ref:     (C_sub, H2_pad) bf16  node_classifier weight, transposed + padded
    b2_ref:     (C_sub, 1)      f32
    batch_ref:  (1, TM)         i32   graph id per node, -1 on padded lanes
    logits_ref: (C_sub, TM)     f32   node_logits tile (transposed, lane-dense)
    pmax_ref:   (G_sub, 128)    f32   this tile's partial per-graph max
    """
    # out_proj + ReLU:  h^T = relu(W1^T x^T + b1)   -- (H2_pad, TM), f32 acc.
    h = jnp.dot(w1_ref[...], x_ref[...],
                preferred_element_type=jnp.float32) + b1_ref[...]
    h = jnp.maximum(h, 0.0)

    # node_classifier:  logits^T = W2^T h^T + b2    -- (C_sub, TM), f32 acc.
    logits = jnp.dot(w2_ref[...], h.astype(jnp.bfloat16),
                     preferred_element_type=jnp.float32) + b2_ref[...]
    logits_ref[...] = logits

    # Segmented max of sigmoid(node_logits[:, 1]) per graph.  Graphs sit on
    # sublanes (8 per block), nodes on lanes; 128-lane chunks keep the running
    # max at a single vreg (no big masked intermediate, no spill).
    tm = logits_ref.shape[1]
    g_sub = pmax_ref.shape[0]
    chunk = 128
    # TODO(synk): for num_graphs >> 8 the dense select is O(G/8 * N) VPU work;
    # switch to a scatter/sort based pool if that ever binds.
    for gb in range(g_sub // 8):
        gids = gb * 8 + jax.lax.broadcasted_iota(jnp.int32, (8, chunk), 0)
        run = jnp.full((8, chunk), -jnp.inf, jnp.float32)
        for cc in range(tm // chunk):
            lo, hi = cc * chunk, (cc + 1) * chunk
            p = jax.nn.sigmoid(logits_ref[1:2, lo:hi])        # (1, chunk) f32
            b = batch_ref[:, lo:hi]                           # (1, chunk) i32
            run = jnp.maximum(run, jnp.where(b == gids, p, -jnp.inf))
        tile_max = jnp.max(run, axis=1, keepdims=True)        # (8, 1)
        pmax_ref[gb * 8:(gb + 1) * 8, :] = jnp.broadcast_to(tile_max, (8, chunk))


def finetuned_head(node_embeddings, batch, w1, b1, w2, b2, num_graphs, *, tm=2048):
    """Fused head.  node_embeddings: [N, H] float, batch: [N] int graph ids."""
    n, h = node_embeddings.shape
    h2 = w1.shape[1]
    c = w2.shape[1]
    h2_pad = _round_up(h2, 128)
    c_sub = _round_up(c, 8)
    g_sub = _round_up(num_graphs, 8)

    # Lane tile over nodes: multiple of 128; force >= 2 tiles when there is
    # enough work so the "parallel" axis can shard across both v7x TCs.
    n_lanes = _round_up(n, 128)
    max_tm = n_lanes if n_lanes < 256 else _round_up(n_lanes // 2, 128)
    tm = max(128, min(_round_up(tm, 128), max_tm))
    n_pad = _round_up(n_lanes, tm)
    num_tiles = n_pad // tm

    # TODO(synk): emit bf16 feature-major embeddings directly from the
    # pretrained encoder to skip this wrapper-side pad/cast/transpose pass.
    x_t = jnp.zeros((h, n_pad), jnp.bfloat16)
    x_t = x_t.at[:, :n].set(node_embeddings.astype(jnp.bfloat16).T)
    # Padded lanes carry graph id -1 so they can never win the segmented max.
    batch_p = jnp.full((1, n_pad), -1, jnp.int32)
    batch_p = batch_p.at[0, :n].set(batch.astype(jnp.int32))

    w1t = jnp.zeros((h2_pad, h), jnp.bfloat16).at[:h2, :].set(
        w1.astype(jnp.bfloat16).T)
    b1t = jnp.zeros((h2_pad, 1), jnp.float32).at[:h2, 0].set(
        b1.reshape(-1).astype(jnp.float32))
    w2t = jnp.zeros((c_sub, h2_pad), jnp.bfloat16).at[:c, :h2].set(
        w2.astype(jnp.bfloat16).T)
    b2t = jnp.zeros((c_sub, 1), jnp.float32).at[:c, 0].set(
        b2.reshape(-1).astype(jnp.float32))

    logits_t, pmax = pl.pallas_call(
        _head_kernel,
        out_shape=(
            jax.ShapeDtypeStruct((c_sub, n_pad), jnp.float32),
            jax.ShapeDtypeStruct((g_sub, num_tiles * 128), jnp.float32),
        ),
        grid_spec=pltpu.PrefetchScalarGridSpec(
            num_scalar_prefetch=0,
            grid=(num_tiles,),
            in_specs=[
                pl.BlockSpec((h, tm), lambda i: (0, i)),          # x^T: tiled over N
                pl.BlockSpec((h2_pad, h), lambda i: (0, 0)),      # w1^T: resident
                pl.BlockSpec((h2_pad, 1), lambda i: (0, 0)),      # b1: resident
                pl.BlockSpec((c_sub, h2_pad), lambda i: (0, 0)),  # w2^T: resident
                pl.BlockSpec((c_sub, 1), lambda i: (0, 0)),       # b2: resident
                pl.BlockSpec((1, tm), lambda i: (0, i)),          # batch ids
            ],
            out_specs=(
                pl.BlockSpec((c_sub, tm), lambda i: (0, i)),      # node_logits^T
                pl.BlockSpec((g_sub, 128), lambda i: (0, i)),     # per-tile max
            ),
        ),
        compiler_params=pltpu.CompilerParams(
            dimension_semantics=("parallel",),   # no carried state -> megacore OK
        ),
    )(x_t, w1t, b1t, w2t, b2t, batch_p)

    # Tiny cross-tile combine + logit transform: plain JAX (review-endorsed),
    # scale-safe (no whole-array VMEM requirement) and one fewer launch.
    graph_prob = jnp.max(pmax, axis=1)[:num_graphs]
    graph_logits = jnp.log(graph_prob / (1.0 - graph_prob + 1e-8))

    # Slice padding and return node-major logits per the module API.
    # TODO(synk): downstream consumers could take the (C_sub, N) slab directly.
    node_logits = logits_t[:c, :n].T
    return node_logits, graph_logits


def _reference(node_embeddings, batch, w1, b1, w2, b2, num_graphs):
    # Mirrors the kernel numerics (bf16 matmul operands, f32 accumulation).
    xb = node_embeddings.astype(jnp.bfloat16)
    hh = jnp.dot(xb, w1.astype(jnp.bfloat16),
                 preferred_element_type=jnp.float32) + b1.reshape(1, -1)
    hh = jnp.maximum(hh, 0.0)
    node_logits = jnp.dot(hh.astype(jnp.bfloat16), w2.astype(jnp.bfloat16),
                          preferred_element_type=jnp.float32) + b2.reshape(1, -1)
    probs = jax.nn.sigmoid(node_logits[:, 1])
    gids = jnp.arange(num_graphs)
    masked = jnp.where(batch[:, None] == gids[None, :], probs[:, None], -jnp.inf)
    graph_prob = jnp.max(masked, axis=0)
    graph_logits = jnp.log(graph_prob / (1.0 - graph_prob + 1e-8))
    return node_logits, graph_logits


if __name__ == "__main__":
    # Small shapes consistent with the module's forward pass.
    num_nodes = 16        # total nodes across the batch of graphs
    in_feat = 8           # raw node feature dim (input to the "pretrained" model)
    hidden_dim = 32
    num_classes = 4       # forward uses node_logits[:, 1], so >= 2
    num_graphs = 2

    key = jax.random.PRNGKey(0)
    k_x, k_pre, k_w1, k_b1, k_w2, k_b2 = jax.random.split(key, 6)

    # Synthesized pretrained_model: deterministic linear embed + tanh (glue,
    # stands in for the black-box transformer that yields node_embeddings).
    raw_feats = jax.random.normal(k_x, (num_nodes, in_feat), dtype=jnp.float32)
    w_pre = jax.random.normal(k_pre, (in_feat, hidden_dim), dtype=jnp.float32) * 0.1
    node_embeddings = jnp.tanh(raw_feats @ w_pre)            # [N, H]

    # out_proj: Linear(hidden_dim, hidden_dim // 2)  (PyTorch-style uniform init)
    h2 = hidden_dim // 2
    lim1 = 1.0 / (hidden_dim ** 0.5)
    w1 = jax.random.uniform(k_w1, (hidden_dim, h2), jnp.float32, -lim1, lim1)
    b1 = jax.random.uniform(k_b1, (1, h2), jnp.float32, -lim1, lim1)

    # node_classifier: Linear(hidden_dim // 2, num_classes)
    lim2 = 1.0 / (h2 ** 0.5)
    w2 = jax.random.uniform(k_w2, (h2, num_classes), jnp.float32, -lim2, lim2)
    b2 = jax.random.uniform(k_b2, (1, num_classes), jnp.float32, -lim2, lim2)

    # batched_data.batch: graph id per node (every graph non-empty; an empty
    # graph would yield -inf pooled prob -> NaN logit, same as the PyTorch ref).
    batch = jnp.concatenate([
        jnp.zeros((num_nodes // 2,), jnp.int32),
        jnp.ones((num_nodes - num_nodes // 2,), jnp.int32),
    ])

    node_logits, graph_logits = finetuned_head(
        node_embeddings, batch, w1, b1, w2, b2, num_graphs)
    node_logits = jax.block_until_ready(node_logits)
    graph_logits = jax.block_until_ready(graph_logits)

    ref_nl, ref_gl = _reference(node_embeddings, batch, w1, b1, w2, b2, num_graphs)
    assert node_logits.shape == (num_nodes, num_classes)
    assert graph_logits.shape == (num_graphs,)
    assert jnp.allclose(node_logits, ref_nl, atol=1e-2, rtol=1e-2)
    assert jnp.allclose(graph_logits, ref_gl, atol=1e-2, rtol=1e-2)

    print("KERNEL_OK")
</pallas_src>

<mosaic_0001>
module attributes {stable_mosaic.version = 11 : i64} {
  func.func @_head_kernel(%arg0: i32, %arg1: memref<32x128xbf16, #tpu.memory_space<vmem>>, %arg2: memref<128x32xbf16, #tpu.memory_space<vmem>>, %arg3: memref<128x1xf32, #tpu.memory_space<vmem>>, %arg4: memref<8x128xbf16, #tpu.memory_space<vmem>>, %arg5: memref<8x1xf32, #tpu.memory_space<vmem>>, %arg6: memref<1x128xi32, #tpu.memory_space<vmem>>, %arg7: memref<8x128xf32, #tpu.memory_space<vmem>>, %arg8: memref<8x128xf32, #tpu.memory_space<vmem>>) attributes {dimension_semantics = [#tpu.dimension_semantics<parallel>], iteration_bounds = array<i64: 1>, scalar_prefetch = 0 : i64, scratch_operands = 0 : i64, tpu.core_type = #tpu.core_type<tc>, window_params = [{transform_indices = @transform_0, window_bounds = array<i64: 32, 128>}, {pipeline_mode = #tpu.pipeline_mode<synchronous>, transform_indices = @transform_1, window_bounds = array<i64: 128, 32>}, {pipeline_mode = #tpu.pipeline_mode<synchronous>, transform_indices = @transform_2, window_bounds = array<i64: 128, 1>}, {pipeline_mode = #tpu.pipeline_mode<synchronous>, transform_indices = @transform_3, window_bounds = array<i64: 8, 128>}, {pipeline_mode = #tpu.pipeline_mode<synchronous>, transform_indices = @transform_4, window_bounds = array<i64: 8, 1>}, {transform_indices = @transform_5, window_bounds = array<i64: 1, 128>}, {transform_indices = @transform_6, window_bounds = array<i64: 8, 128>}, {transform_indices = @transform_7, window_bounds = array<i64: 8, 128>}]} {
    %c0 = arith.constant 0 : index
    %c0_0 = arith.constant 0 : index
    %0 = vector.load %arg2[%c0, %c0_0] : memref<128x32xbf16, #tpu.memory_space<vmem>>, vector<128x32xbf16>
    %c0_1 = arith.constant 0 : index
    %c0_2 = arith.constant 0 : index
    %1 = vector.load %arg1[%c0_1, %c0_2] : memref<32x128xbf16, #tpu.memory_space<vmem>>, vector<32x128xbf16>
    %cst = arith.constant dense<0.000000e+00> : vector<128x128xf32>
    %2 = tpu.matmul %0, %1, %cst {dimension_numbers = #tpu.dot_dimension_numbers<[1], [0], [0], [1], [0, 0, 1, 1], [], []>} : vector<128x32xbf16>, vector<32x128xbf16>, vector<128x128xf32> -> vector<128x128xf32>
    %c0_3 = arith.constant 0 : index
    %c0_4 = arith.constant 0 : index
    %3 = vector.load %arg3[%c0_3, %c0_4] : memref<128x1xf32, #tpu.memory_space<vmem>>, vector<128x1xf32>
    %4 = vector.broadcast %3 : vector<128x1xf32> to vector<128x128xf32>
    %5 = arith.addf %2, %4 : vector<128x128xf32>
    %cst_5 = arith.constant 0.000000e+00 : f32
    %6 = vector.broadcast %cst_5 : f32 to vector<128x128xf32>
    %7 = arith.maximumf %5, %6 : vector<128x128xf32>
    %c0_6 = arith.constant 0 : index
    %c0_7 = arith.constant 0 : index
    %8 = vector.load %arg4[%c0_6, %c0_7] : memref<8x128xbf16, #tpu.memory_space<vmem>>, vector<8x128xbf16>
    %9 = arith.truncf %7 : vector<128x128xf32> to vector<128x128xbf16>
    %cst_8 = arith.constant dense<0.000000e+00> : vector<8x128xf32>
    %10 = tpu.matmul %8, %9, %cst_8 {dimension_numbers = #tpu.dot_dimension_numbers<[1], [0], [0], [1], [0, 0, 1, 1], [], []>} : vector<8x128xbf16>, vector<128x128xbf16>, vector<8x128xf32> -> vector<8x128xf32>
    %c0_9 = arith.constant 0 : index
    %c0_10 = arith.constant 0 : index
    %11 = vector.load %arg5[%c0_9, %c0_10] : memref<8x1xf32, #tpu.memory_space<vmem>>, vector<8x1xf32>
    %12 = vector.broadcast %11 : vector<8x1xf32> to vector<8x128xf32>
    %13 = arith.addf %10, %12 : vector<8x128xf32>
    %c0_11 = arith.constant 0 : index
    %c0_12 = arith.constant 0 : index
    %14 = vector.load %arg7[%c0_11, %c0_12] : memref<8x128xf32, #tpu.memory_space<vmem>>, vector<8x128xf32>
    tpu.vector_store %arg7[%c0_11, %c0_12], %13 {strides = array<i32>} : memref<8x128xf32, #tpu.memory_space<vmem>>, vector<8x128xf32>,
    %15 = tpu.iota {dimensions = array<i32: 0>} : vector<8x128xi32>
    %c0_i32 = arith.constant 0 : i32
    %16 = vector.broadcast %c0_i32 : i32 to vector<8x128xi32>
    %17 = arith.addi %16, %15 : vector<8x128xi32>
    %cst_13 = arith.constant 0xFF800000 : f32
    %18 = vector.broadcast %cst_13 : f32 to vector<8x128xf32>
    %c1 = arith.constant 1 : index
    %c0_14 = arith.constant 0 : index
    %19 = vector.load %arg7[%c1, %c0_14] : memref<8x128xf32, #tpu.memory_space<vmem>>, vector<1x128xf32>
    %20 = arith.negf %19 : vector<1x128xf32>
    %21 = math.exp %20 : vector<1x128xf32>
    %cst_15 = arith.constant 1.000000e+00 : f32
    %22 = vector.broadcast %cst_15 : f32 to vector<1x128xf32>
    %23 = arith.addf %22, %21 : vector<1x128xf32>
    %24 = arith.divf %22, %23 : vector<1x128xf32>
    %c0_16 = arith.constant 0 : index
    %c0_17 = arith.constant 0 : index
    %25 = vector.load %arg6[%c0_16, %c0_17] : memref<1x128xi32, #tpu.memory_space<vmem>>, vector<1x128xi32>
    %26 = vector.broadcast %25 : vector<1x128xi32> to vector<8x128xi32>
    %27 = arith.cmpi eq, %26, %17 : vector<8x128xi32>
    %cst_18 = arith.constant 0xFF800000 : f32
    %28 = vector.shape_cast %24 : vector<1x128xf32> to vector<1x128xf32>
    %29 = vector.broadcast %28 : vector<1x128xf32> to vector<8x128xf32>
    %30 = vector.broadcast %cst_18 : f32 to vector<8x128xf32>
    %31 = arith.select %27, %29, %30 : vector<8x128xi1>, vector<8x128xf32>
    %32 = arith.maximumf %18, %31 : vector<8x128xf32>
    %cst_19 = arith.constant dense<0xFF800000> : vector<8xf32>
    %33 = vector.multi_reduction <maximumf>, %32, %cst_19 [1] : vector<8x128xf32> to vector<8xf32>
    %34 = vector.shape_cast %33 : vector<8xf32> to vector<8x1xf32>
    %35 = vector.shape_cast %34 : vector<8x1xf32> to vector<8x1xf32>
    %36 = vector.broadcast %35 : vector<8x1xf32> to vector<8x128xf32>
    %c0_20 = arith.constant 0 : index
    %c0_21 = arith.constant 0 : index
    %37 = vector.load %arg8[%c0_20, %c0_21] : memref<8x128xf32, #tpu.memory_space<vmem>>, vector<8x128xf32>
    tpu.vector_store %arg8[%c0_20, %c0_21], %36 {strides = array<i32>} : memref<8x128xf32, #tpu.memory_space<vmem>>, vector<8x128xf32>,
    return
  }
  func.func @transform_0(%arg0: i32) -> (i32, i32) {
    %c0_i32 = arith.constant 0 : i32
    %c0_i32_0 = arith.constant 0 : i32
    return %c0_i32, %arg0 : i32, i32
  }
  func.func @transform_1(%arg0: i32) -> (i32, i32) {
    %c0_i32 = arith.constant 0 : i32
    %c0_i32_0 = arith.constant 0 : i32
    %c0_i32_1 = arith.constant 0 : i32
    return %c0_i32, %c0_i32_0 : i32, i32
  }
  func.func @transform_2(%arg0: i32) -> (i32, i32) {
    %c0_i32 = arith.constant 0 : i32
    %c0_i32_0 = arith.constant 0 : i32
    %c0_i32_1 = arith.constant 0 : i32
    return %c0_i32, %c0_i32_0 : i32, i32
  }
  func.func @transform_3(%arg0: i32) -> (i32, i32) {
    %c0_i32 = arith.constant 0 : i32
    %c0_i32_0 = arith.constant 0 : i32
    %c0_i32_1 = arith.constant 0 : i32
    return %c0_i32, %c0_i32_0 : i32, i32
  }
  func.func @transform_4(%arg0: i32) -> (i32, i32) {
    %c0_i32 = arith.constant 0 : i32
    %c0_i32_0 = arith.constant 0 : i32
    %c0_i32_1 = arith.constant 0 : i32
    return %c0_i32, %c0_i32_0 : i32, i32
  }
  func.func @transform_5(%arg0: i32) -> (i32, i32) {
    %c0_i32 = arith.constant 0 : i32
    %c0_i32_0 = arith.constant 0 : i32
    return %c0_i32, %arg0 : i32, i32
  }
  func.func @transform_6(%arg0: i32) -> (i32, i32) {
    %c0_i32 = arith.constant 0 : i32
    %c0_i32_0 = arith.constant 0 : i32
    return %c0_i32, %arg0 : i32, i32
  }
  func.func @transform_7(%arg0: i32) -> (i32, i32) {
    %c0_i32 = arith.constant 0 : i32
    %c0_i32_0 = arith.constant 0 : i32
    return %c0_i32, %arg0 : i32, i32
  }
}

</mosaic_0001>

<llo_original>
// kernel: tpu_custom_call.1
$region0: #{tpu_custom_call.1}
  #allocation0 [shape = 'u32[]', space=smem, size = 0x4, offset = 0x4, fixed_abs, tag = 'smem constant byte address 0x4 - core index']
  #allocation1 [shape = 'u32[144,128]{1,0:T(1,128)}', space=vmem, size = 0x12000, scoped, tag = 'internal scratch']
  %s0 = inlined_call_operand.vmem [shape: bf16[32,128], index: 0, kind: input, shape index: {}]
  %s1 = inlined_call_operand.vmem [shape: bf16[128,32], index: 1, kind: input, shape index: {}]
  %s2 = inlined_call_operand.vmem [shape: f32[128,1], index: 2, kind: input, shape index: {}]
  %s3 = inlined_call_operand.vmem [shape: bf16[8,128], index: 3, kind: input, shape index: {}]
  %s4 = inlined_call_operand.vmem [shape: f32[8,1], index: 4, kind: input, shape index: {}]
  %s5 = inlined_call_operand.vmem [shape: s32[1,128], index: 5, kind: input, shape index: {}]
  %s6 = inlined_call_operand.hbm [shape: f32[8,128], index: 6, kind: output, shape index: {0}]
  %s7 = inlined_call_operand.hbm [shape: f32[8,128], index: 7, kind: output, shape index: {1}]
  %8 = xla_tuple %s6, %s7
  %s9 = sld [smem:[#allocation0]]
  $region42: #{tpu_custom_call.1} parent=0
    _
  %s11 = ssub.s32 1, %s9
  %s12 = scalar_select 0, %s11, %s9
  $region1: #{tpu_custom_call.1} parent=0
    #allocation2 [shape = 'u8[4096]{0}', space=vmem, size = 0x1000, scoped, tag = 'output window, operand 0, single buffered']
    #allocation3 [shape = 's32[1]{0}', space=sflag, size = 0x4, scoped, tag = 'scoped memory for tpu_custom_call.1']
    #allocation4 [shape = 'u8[4096]{0}', space=vmem, size = 0x1000, scoped, tag = 'output window, operand 1, single buffered']
    #allocation5 [shape = 's32[1]{0}', space=sflag, size = 0x4, scoped, tag = 'scoped memory for tpu_custom_call.1']
    %13 = vsyncpa [#allocation3], 0
    %14 = vsyncpa [#allocation5], 0
    // Predicated region
    $region2: #{tpu_custom_call.1} parent=1 // pred_check
      _
    $region3: #{tpu_custom_call.1} parent=1 // pred_check_branch
      %16 = sbr.rel (0) target = $region5
    $region4: #{tpu_custom_call.1} parent=1 // pred_region
      _
    $region5: #{tpu_custom_call.1} parent=1 // pred_fallthru
      _
    // Predicated region
    $region6: #{tpu_custom_call.1} parent=1 // pred_check
      _
    $region7: #{tpu_custom_call.1} parent=1 // pred_check_branch
      %18 = sbr.rel (0) target = $region9
    $region8: #{tpu_custom_call.1} parent=1 // pred_region
      _
    $region9: #{tpu_custom_call.1} parent=1 // pred_fallthru
      _
    // Predicated region
    $region10: #{tpu_custom_call.1} parent=1 // pred_check
      _
    $region11: #{tpu_custom_call.1} parent=1 // pred_check_branch
      %20 = sbr.rel (0) target = $region13
    $region12: #{tpu_custom_call.1} parent=1 // pred_region
      _
    $region13: #{tpu_custom_call.1} parent=1 // pred_fallthru
      _
    // Predicated region
    $region14: #{tpu_custom_call.1} parent=1 // pred_check
      _
    $region15: #{tpu_custom_call.1} parent=1 // pred_check_branch
      %22 = sbr.rel (0) target = $region17
    $region16: #{tpu_custom_call.1} parent=1 // pred_region
      _
    $region17: #{tpu_custom_call.1} parent=1 // pred_fallthru
      _
    // Predicated region
    $region18: #{tpu_custom_call.1} parent=1 // pred_check
      _
    $region19: #{tpu_custom_call.1} parent=1 // pred_check_branch
      %24 = sbr.rel (0) target = $region21
    $region20: #{tpu_custom_call.1} parent=1 // pred_region
      _
    $region21: #{tpu_custom_call.1} parent=1 // pred_fallthru
      _
    // Predicated region
    $region22: #{tpu_custom_call.1} parent=1 // pred_check
      _
    $region23: #{tpu_custom_call.1} parent=1 // pred_check_branch
      %26 = sbr.rel (0) target = $region25
    $region24: #{tpu_custom_call.1} parent=1 // pred_region
      _
    $region25: #{tpu_custom_call.1} parent=1 // pred_fallthru
      _
    %v28 = vld [vmem:[%s1] sm:$0xf]
    %v29 = vld [vmem:[%s1 + $0x4] sm:$0xf]
    %v30 = vld [vmem:[%s1 + $0x8] sm:$0xf]
    %v31 = vld [vmem:[%s1 + $0xc] sm:$0xf]
    %v32 = vld [vmem:[%s1 + $0x10] sm:$0xf]
    %v33 = vld [vmem:[%s1 + $0x14] sm:$0xf]
    %v34 = vld [vmem:[%s1 + $0x18] sm:$0xf]
    %v35 = vld [vmem:[%s1 + $0x1c] sm:$0xf]
    %v36 = vld [vmem:[%s1 + $0x20] sm:$0xf]
    %v37 = vld [vmem:[%s1 + $0x24] sm:$0xf]
    %v38 = vld [vmem:[%s1 + $0x28] sm:$0xf]
    %v39 = vld [vmem:[%s1 + $0x2c] sm:$0xf]
    %v40 = vld [vmem:[%s1 + $0x30] sm:$0xf]
    %v41 = vld [vmem:[%s1 + $0x34] sm:$0xf]
    %v42 = vld [vmem:[%s1 + $0x38] sm:$0xf]
    %v43 = vld [vmem:[%s1 + $0x3c] sm:$0xf]
    %v44 = vld [vmem:[%s0] sm:$0xf]
    %v45 = vld [vmem:[%s0 + $0x4] sm:$0xf]
    %v46 = vld [vmem:[%s0 + $0x8] sm:$0xf]
    %v47 = vld [vmem:[%s0 + $0xc] sm:$0xf]
    %v48 = vld [vmem:[%s2] sm:$0xff]
    %v49 = vld [vmem:[%s2 + $0x8] sm:$0xff]
    %v50 = vld [vmem:[%s2 + $0x10] sm:$0xff]
    %v51 = vld [vmem:[%s2 + $0x18] sm:$0xff]
    %v52 = vld [vmem:[%s2 + $0x20] sm:$0xff]
    %v53 = vld [vmem:[%s2 + $0x28] sm:$0xff]
    %v54 = vld [vmem:[%s2 + $0x30] sm:$0xff]
    %v55 = vld [vmem:[%s2 + $0x38] sm:$0xff]
    %v56 = vld [vmem:[%s2 + $0x40] sm:$0xff]
    %v57 = vld [vmem:[%s2 + $0x48] sm:$0xff]
    %v58 = vld [vmem:[%s2 + $0x50] sm:$0xff]
    %v59 = vld [vmem:[%s2 + $0x58] sm:$0xff]
    %v60 = vld [vmem:[%s2 + $0x60] sm:$0xff]
    %v61 = vld [vmem:[%s2 + $0x68] sm:$0xff]
    %v62 = vld [vmem:[%s2 + $0x70] sm:$0xff]
    %v63 = vld [vmem:[%s2 + $0x78] sm:$0xff]
    %65 = vset.pattern.permute.xlu0 0
    %66 = vperm.xlu0 %65, %v48
    %v67 = vpop.permute.xlu0 %66
    %70 = vset.pattern.permute.xlu0 0
    %71 = vperm.xlu0 %70, %v49
    %v72 = vpop.permute.xlu0 %71
    %75 = vset.pattern.permute.xlu0 0
    %76 = vperm.xlu0 %75, %v50
    %v77 = vpop.permute.xlu0 %76
    %80 = vset.pattern.permute.xlu0 0
    %81 = vperm.xlu0 %80, %v51
    %v82 = vpop.permute.xlu0 %81
    %85 = vset.pattern.permute.xlu0 0
    %86 = vperm.xlu0 %85, %v52
    %v87 = vpop.permute.xlu0 %86
    %90 = vset.pattern.permute.xlu0 0
    %91 = vperm.xlu0 %90, %v53
    %v92 = vpop.permute.xlu0 %91
    %95 = vset.pattern.permute.xlu0 0
    %96 = vperm.xlu0 %95, %v54
    %v97 = vpop.permute.xlu0 %96
    %100 = vset.pattern.permute.xlu0 0
    %101 = vperm.xlu0 %100, %v55
    %v102 = vpop.permute.xlu0 %101
    %105 = vset.pattern.permute.xlu0 0
    %106 = vperm.xlu0 %105, %v56
    %v107 = vpop.permute.xlu0 %106
    %110 = vset.pattern.permute.xlu0 0
    %111 = vperm.xlu0 %110, %v57
    %v112 = vpop.permute.xlu0 %111
    %115 = vset.pattern.permute.xlu0 0
    %116 = vperm.xlu0 %115, %v58
    %v117 = vpop.permute.xlu0 %116
    %120 = vset.pattern.permute.xlu0 0
    %121 = vperm.xlu0 %120, %v59
    %v122 = vpop.permute.xlu0 %121
    %125 = vset.pattern.permute.xlu0 0
    %126 = vperm.xlu0 %125, %v60
    %v127 = vpop.permute.xlu0 %126
    %130 = vset.pattern.permute.xlu0 0
    %131 = vperm.xlu0 %130, %v61
    %v132 = vpop.permute.xlu0 %131
    %135 = vset.pattern.permute.xlu0 0
    %136 = vperm.xlu0 %135, %v62
    %v137 = vpop.permute.xlu0 %136
    %140 = vset.pattern.permute.xlu0 0
    %141 = vperm.xlu0 %140, %v63
    %v142 = vpop.permute.xlu0 %141
    %v160 = vunpack.c.l.b16 %v28
    %v161 = vunpack.c.l.b16 %v29
    %v162 = vunpack.c.l.b16 %v30
    %v163 = vunpack.c.l.b16 %v31
    %v164 = vunpack.c.l.b16 %v32
    %v165 = vunpack.c.l.b16 %v33
    %v166 = vunpack.c.l.b16 %v34
    %v167 = vunpack.c.l.b16 %v35
    %v168 = vunpack.c.l.b16 %v36
    %v169 = vunpack.c.l.b16 %v37
    %v170 = vunpack.c.l.b16 %v38
    %v171 = vunpack.c.l.b16 %v39
    %v172 = vunpack.c.l.b16 %v40
    %v173 = vunpack.c.l.b16 %v41
    %v174 = vunpack.c.l.b16 %v42
    %v175 = vunpack.c.l.b16 %v43
    %v176 = vpack.c.b16 %v161, %v160
    %v177 = vpack.c.b16 %v163, %v162
    %v178 = vpack.c.b16 %v165, %v164
    %v179 = vpack.c.b16 %v167, %v166
    %v180 = vpack.c.b16 %v169, %v168
    %v181 = vpack.c.b16 %v171, %v170
    %v182 = vpack.c.b16 %v173, %v172
    %v183 = vpack.c.b16 %v175, %v174
    %v188 = vunpack.c.l.b16 %v44
    %v189 = vunpack.c.l.b16 %v45
    %v190 = vunpack.c.l.b16 %v46
    %v191 = vunpack.c.l.b16 %v47
    %v192 = vpack.c.b16 %v189, %v188
    %v193 = vpack.c.b16 %v191, %v190
    %vm196 = vcmask 261120
    %v198 = vsel %vm196, %v176, 0
    %v201 = vsel %vm196, %v177, 0
    %v204 = vsel %vm196, %v178, 0
    %v207 = vsel %vm196, %v179, 0
    %v210 = vsel %vm196, %v180, 0
    %v213 = vsel %vm196, %v181, 0
    %v216 = vsel %vm196, %v182, 0
    %v219 = vsel %vm196, %v183, 0
    %221 = vmatprep.subr.bf16.mxu0 0
    %222 = vmatpush1.bf16.msra.mxu0 %v192
    %223 = vmatprep.subr.bf16.mxu0 0
    %224 = vmatpush1.bf16.msra.mxu0 %v193
    %225 = vmatprep.subr.bf16.mxu0 0
    %226 = vmatpush1.bf16.msra.mxu0 0
    %227 = vmatprep.subr.bf16.mxu0 0
    %228 = vmatpush1.bf16.msra.mxu0 0
    %229 = vmatprep.subr.bf16.mxu0 0
    %230 = vmatpush1.bf16.msra.mxu0 0
    %231 = vmatprep.subr.bf16.mxu0 0
    %232 = vmatpush1.bf16.msra.mxu0 0
    %233 = vmatprep.subr.bf16.mxu0 0
    %234 = vmatpush1.bf16.msra.mxu0 0
    %235 = vmatprep.subr.bf16.mxu0 0
    %236 = vmatpush1.bf16.msra.mxu0 0
    %237 = vmatprep.subr.bf16.mxu0 0
    %238 = vmatpush1.bf16.msra.mxu0 0
    %239 = vmatprep.subr.bf16.mxu0 0
    %240 = vmatpush1.bf16.msra.mxu0 0
    %241 = vmatprep.subr.bf16.mxu0 0
    %242 = vmatpush1.bf16.msra.mxu0 0
    %243 = vmatprep.subr.bf16.mxu0 0
    %244 = vmatpush1.bf16.msra.mxu0 0
    %245 = vmatprep.subr.bf16.mxu0 0
    %246 = vmatpush1.bf16.msra.mxu0 0
    %247 = vmatprep.subr.bf16.mxu0 0
    %248 = vmatpush1.bf16.msra.mxu0 0
    %249 = vmatprep.subr.bf16.mxu0 0
    %250 = vmatpush1.bf16.msra.mxu0 0
    %251 = vmatprep.subr.bf16.mxu0 0
    %252 = vmatpush1.bf16.msra.mxu0 0
    %253 = vmatprep.mubr.bf16.mxu0 0
    %254 = vmatmul.mubr.bf16.gmra.mrb[0].mxu0 %v198
    %v255 = vpop.f32.mrb[0].mxu0
    %v256 = vadd.f32 %v67, %v255
    %v257 = vpop.f32.mrb[0].mxu0
    %v258 = vpop.f32.mrb[0].mxu0
    %v259 = vadd.f32 %v72, %v258
    %v260 = vpop.f32.mrb[0].mxu0
    %261 = vmatprep.mubr.bf16.mxu0 0
    %262 = vmatmul.mubr.bf16.gmra.mrb[0].mxu0 %v201
    %v263 = vpop.f32.mrb[0].mxu0
    %v264 = vadd.f32 %v77, %v263
    %v265 = vpop.f32.mrb[0].mxu0
    %v266 = vpop.f32.mrb[0].mxu0
    %v267 = vadd.f32 %v82, %v266
    %v268 = vpop.f32.mrb[0].mxu0
    %269 = vmatprep.mubr.bf16.mxu0 0
    %270 = vmatmul.mubr.bf16.gmra.mrb[0].mxu0 %v204
    %v271 = vpop.f32.mrb[0].mxu0
    %v272 = vadd.f32 %v87, %v271
    %v273 = vpop.f32.mrb[0].mxu0
    %v274 = vpop.f32.mrb[0].mxu0
    %v275 = vadd.f32 %v92, %v274
    %v276 = vpop.f32.mrb[0].mxu0
    %277 = vmatprep.mubr.bf16.mxu0 0
    %278 = vmatmul.mubr.bf16.gmra.mrb[0].mxu0 %v207
    %v279 = vpop.f32.mrb[0].mxu0
    %v280 = vadd.f32 %v97, %v279
    %v281 = vpop.f32.mrb[0].mxu0
    %v282 = vpop.f32.mrb[0].mxu0
    %v283 = vadd.f32 %v102, %v282
    %v284 = vpop.f32.mrb[0].mxu0
    %285 = vmatprep.mubr.bf16.mxu0 0
    %286 = vmatmul.mubr.bf16.gmra.mrb[0].mxu0 %v210
    %v287 = vpop.f32.mrb[0].mxu0
    %v288 = vadd.f32 %v107, %v287
    %v289 = vpop.f32.mrb[0].mxu0
    %v290 = vpop.f32.mrb[0].mxu0
    %v291 = vadd.f32 %v112, %v290
    %v292 = vpop.f32.mrb[0].mxu0
    %293 = vmatprep.mubr.bf16.mxu0 0
    %294 = vmatmul.mubr.bf16.gmra.mrb[0].mxu0 %v213
    %v295 = vpop.f32.mrb[0].mxu0
    %v296 = vadd.f32 %v117, %v295
    %v297 = vpop.f32.mrb[0].mxu0
    %v298 = vpop.f32.mrb[0].mxu0
    %v299 = vadd.f32 %v122, %v298
    %v300 = vpop.f32.mrb[0].mxu0
    %301 = vmatprep.mubr.bf16.mxu0 0
    %302 = vmatmul.mubr.bf16.gmra.mrb[0].mxu0 %v216
    %v303 = vpop.f32.mrb[0].mxu0
    %v304 = vadd.f32 %v127, %v303
    %v305 = vpop.f32.mrb[0].mxu0
    %v306 = vpop.f32.mrb[0].mxu0
    %v307 = vadd.f32 %v132, %v306
    %v308 = vpop.f32.mrb[0].mxu0
    %309 = vmatprep.mubr.bf16.mxu0 0
    %310 = vmatmul.mubr.bf16.gmra.mrb[0].mxu0 %v219
    %v311 = vpop.f32.mrb[0].mxu0
    %v312 = vadd.f32 %v137, %v311
    %v313 = vpop.f32.mrb[0].mxu0
    %v314 = vpop.f32.mrb[0].mxu0
    %v315 = vadd.f32 %v142, %v314
    %v316 = vpop.f32.mrb[0].mxu0
    %317 = vdwg.mxu0
    %v318 = vmax.f32 %v256, 0.0
    %v319 = vmax.f32 %v259, 0.0
    %v320 = vmax.f32 %v264, 0.0
    %v321 = vmax.f32 %v267, 0.0
    %v322 = vmax.f32 %v272, 0.0
    %v323 = vmax.f32 %v275, 0.0
    %v324 = vmax.f32 %v280, 0.0
    %v325 = vmax.f32 %v283, 0.0
    %v326 = vmax.f32 %v288, 0.0
    %v327 = vmax.f32 %v291, 0.0
    %v328 = vmax.f32 %v296, 0.0
    %v329 = vmax.f32 %v299, 0.0
    %v330 = vmax.f32 %v304, 0.0
    %v331 = vmax.f32 %v307, 0.0
    %v332 = vmax.f32 %v312, 0.0
    %v333 = vmax.f32 %v315, 0.0
    %v334 = vld [vmem:[%s3] sm:$0xf]
    %v335 = vpack.c.bf16 %v319, %v318
    %v336 = vpack.c.bf16 %v321, %v320
    %v337 = vpack.c.bf16 %v323, %v322
    %v338 = vpack.c.bf16 %v325, %v324
    %v339 = vpack.c.bf16 %v327, %v326
    %v340 = vpack.c.bf16 %v329, %v328
    %v341 = vpack.c.bf16 %v331, %v330
    %v342 = vpack.c.bf16 %v333, %v332
    %v343 = vld [vmem:[%s4] sm:$0xff]
    %345 = vset.pattern.permute.xlu0 0
    %346 = vperm.xlu0 %345, %v343
    %v347 = vpop.permute.xlu0 %346
    %349 = vmatprep.subr.bf16.mxu0 0
    %350 = vmatpush1.bf16.msra.mxu0 %v335
    %351 = vmatprep.subr.bf16.mxu0 0
    %352 = vmatpush1.bf16.msra.mxu0 %v336
    %353 = vmatprep.subr.bf16.mxu0 0
    %354 = vmatpush1.bf16.msra.mxu0 %v337
    %355 = vmatprep.subr.bf16.mxu0 0
    %356 = vmatpush1.bf16.msra.mxu0 %v338
    %357 = vmatprep.subr.bf16.mxu0 0
    %358 = vmatpush1.bf16.msra.mxu0 %v339
    %359 = vmatprep.subr.bf16.mxu0 0
    %360 = vmatpush1.bf16.msra.mxu0 %v340
    %361 = vmatprep.subr.bf16.mxu0 0
    %362 = vmatpush1.bf16.msra.mxu0 %v341
    %363 = vmatprep.subr.bf16.mxu0 0
    %364 = vmatpush1.bf16.msra.mxu0 %v342
    %365 = vmatprep.subr.bf16.mxu0 0
    %366 = vmatpush1.bf16.msra.mxu0 0
    %367 = vmatprep.subr.bf16.mxu0 0
    %368 = vmatpush1.bf16.msra.mxu0 0
    %369 = vmatprep.subr.bf16.mxu0 0
    %370 = vmatpush1.bf16.msra.mxu0 0
    %371 = vmatprep.subr.bf16.mxu0 0
    %372 = vmatpush1.bf16.msra.mxu0 0
    %373 = vmatprep.subr.bf16.mxu0 0
    %374 = vmatpush1.bf16.msra.mxu0 0
    %375 = vmatprep.subr.bf16.mxu0 0
    %376 = vmatpush1.bf16.msra.mxu0 0
    %377 = vmatprep.subr.bf16.mxu0 0
    %378 = vmatpush1.bf16.msra.mxu0 0
    %379 = vmatprep.subr.bf16.mxu0 0
    %380 = vmatpush1.bf16.msra.mxu0 0
    %381 = vmatprep.mubr.bf16.mxu0 0
    %382 = vmatmul.mubr.bf16.gmra.mrb[0].mxu0 %v334
    %v383 = vpop.f32.mrb[0].mxu0
    %v384 = vadd.f32 %v347, %v383
    %v385 = vpop.f32.mrb[0].mxu0
    %v386 = vpop.f32.mrb[0].mxu0
    %v387 = vpop.f32.mrb[0].mxu0
    %388 = vdwg.mxu0
    %389 = vst [vmem:[#allocation2] sm:$0xff] %v384
    %v390 = vlaneseq
    %v391 = vshrl.u32 %v390, 7
    %v392 = vld [vmem:[#allocation2 + $0x1] sm:$0x1]
    %v393 = vxor.u32 %v392, 2147483648
    %v394 = vmul.f32 %v393, 1.442695
    %v395 = vpow.pop %v394
    %v396 = vadd.f32 %v395, 1.0
    %v397 = vrcp.pop %v396
    %v398 = vmul.f32 1.0, %v397
    %v399 = vld [vmem:[%s5] sm:$0x1]
    %v400 = vlaneseq
    %v401 = vshrl.u32 %v400, 7
    %v402 = vsub.s32 0, %v401
    %v403 = vrot.slane %v399, %v402
    %vm404 = vcmp.eq.s32.totalorder %v403, %v391
    %v405 = vlaneseq
    %v406 = vshrl.u32 %v405, 7
    %v407 = vsub.s32 0, %v406
    %v408 = vrot.slane %v398, %v407
    %v409 = vsel %vm404, %v408, -inf
    %410 = vmax.xlane.f32.xlu0 %v409
    %v411 = vpop.xlane.xlu0 %410
    %412 = vst [vmem:[#allocation4] sm:$0xff] %v411
    // Predicated region
    $region26: #{tpu_custom_call.1} parent=1 // pred_check
      _
    $region27: #{tpu_custom_call.1} parent=1 // pred_check_branch
      %414 = sbr.rel (0) target = $region29
    $region28: #{tpu_custom_call.1} parent=1 // pred_region
      %s416 = ssub.s32 128, 128
      %417 = vsyncadd [#allocation3], %s416
      %s419 = sshll.u32 [#allocation2], 4
      %s420 = int_to_ptr.vmem [resolvable:$true] %s419
      %422 = dma.vmem_to_hbm [thread:$0]  %s420, 128, %s6, [#allocation3]
    $region29: #{tpu_custom_call.1} parent=1 // pred_fallthru
      _
    // Predicated region
    $region30: #{tpu_custom_call.1} parent=1 // pred_check
      _
    $region31: #{tpu_custom_call.1} parent=1 // pred_check_branch
      %424 = sbr.rel (0) target = $region33
    $region32: #{tpu_custom_call.1} parent=1 // pred_region
      %s426 = ssub.s32 128, 128
      %427 = vsyncadd [#allocation5], %s426
      %s429 = sshll.u32 [#allocation4], 4
      %s430 = int_to_ptr.vmem [resolvable:$true] %s429
      %432 = dma.vmem_to_hbm [thread:$0]  %s430, 128, %s7, [#allocation5]
    $region33: #{tpu_custom_call.1} parent=1 // pred_fallthru
      _
    // Predicated region
    $region34: #{tpu_custom_call.1} parent=1 // pred_check
      _
    $region35: #{tpu_custom_call.1} parent=1 // pred_check_branch
      %434 = sbr.rel (0) target = $region37
    $region36: #{tpu_custom_call.1} parent=1 // pred_region
      %435 = dma.done [#allocation3], 128
    $region37: #{tpu_custom_call.1} parent=1 // pred_fallthru
      _
    // Predicated region
    $region38: #{tpu_custom_call.1} parent=1 // pred_check
      _
    $region39: #{tpu_custom_call.1} parent=1 // pred_check_branch
      %437 = sbr.rel (0) target = $region41
    $region40: #{tpu_custom_call.1} parent=1 // pred_region
      %438 = dma.done [#allocation5], 128
    $region41: #{tpu_custom_call.1} parent=1 // pred_fallthru
      _
    %439 = vsyncpa [#allocation3], 1
    %440 = vsyncpa [#allocation5], 1

</llo_original>
